<compile_context>
chip_gen: v7x
topology: tpu7x:2x2x1
jax: 0.10.0
libtpu: 0.0.40
codegen_flags: <defaults>
</compile_context>

<pallas_src>
import functools

import jax
import jax.numpy as jnp
from jax.experimental import pallas as pl
from jax.experimental.pallas import tpu as pltpu

_LANE = 128


# ------------------------------ small helpers ------------------------------ #
def _next_pow2(n: int) -> int:
    return 1 << (n - 1).bit_length() if n > 1 else 1


def _round_up(x: int, m: int) -> int:
    return (x + m - 1) // m * m


def _sublane(dtype) -> int:
    # rows per native sublane tile: 8 (f32) / 16 (bf16) / 32 (int8/fp8)
    return 8 * (4 // jnp.dtype(dtype).itemsize)


def _tile_bytes(rows: int, cols: int, dtype) -> int:
    return (_round_up(rows, _sublane(dtype)) * _round_up(cols, _LANE)
            * jnp.dtype(dtype).itemsize)


@functools.lru_cache(maxsize=1)
def _vmem_cap_bytes() -> int:
    try:
        return int(pltpu.get_tpu_info().vmem_capacity_bytes)
    except Exception:
        return 64 << 20  # conservative per-TensorCore default (v7x)


def _vmem_budget_bytes() -> int:
    return max(16 << 20, int(_vmem_cap_bytes() * 0.85))


# -------------------- parameter-only preprocessing (glue) ------------------ #
def get_V(weights: jnp.ndarray) -> jnp.ndarray:
    """Column-normalize weights and pad to (p_dim, p_dim) with identity pad block."""
    dim = weights.shape[0]
    p_dim = _next_pow2(dim)
    pad = p_dim - dim
    norms = jnp.sqrt(jnp.sum(weights * weights, axis=0, keepdims=True))
    Vn = weights / jnp.maximum(norms, 1e-12)  # torch F.normalize eps
    V = jnp.zeros((p_dim, p_dim), weights.dtype)
    V = V.at[:dim, :dim].set(Vn)
    if pad:
        V = V.at[dim:, dim:].add(jnp.eye(pad, dtype=weights.dtype))
    return V


def build_WY(weights: jnp.ndarray):
    """Reproduce the fasthpp WY-accumulation loop (depends only on parameters)."""
    p_dim = _next_pow2(weights.shape[0])
    log2dim = p_dim.bit_length() - 1
    V = get_V(weights)
    Y = V.T
    W = -2.0 * Y
    k = 1
    for _ in range(log2dim):
        k2 = k
        k *= 2
        Wv = W.reshape(p_dim // k2, k2, p_dim)
        Yv = Y.reshape(p_dim // k2, k2, p_dim)
        m1 = jnp.einsum("bij,bkj->bik", Yv[0::2], Wv[1::2])   # Y[0::2] @ W[1::2]^T
        m2 = jnp.einsum("bji,bjk->bik", Wv[0::2], m1)         # W[0::2]^T @ m1
        Wv = Wv.at[1::2].add(jnp.transpose(m2, (0, 2, 1)))
        W = Wv.reshape(p_dim, p_dim)
    return W, Y


def build_M(weights: jnp.ndarray, compute_dtype=None) -> jnp.ndarray:
    """Fused rotation matrix:  M = I + (W^T @ Y)[:dim, :dim]  (shape (dim, dim))."""
    dim = weights.shape[0]
    W, Y = build_WY(weights)
    M = (W.T @ Y)[:dim, :dim] + jnp.eye(dim, dtype=weights.dtype)
    if compute_dtype is not None:
        M = M.astype(compute_dtype)
    return M


# ------------------------------ Pallas kernel ------------------------------ #
def _hh_matmul_kernel(m_ref, x_ref, o_ref):
    # One MXU matmul with f32 accumulation.  The X tile is cast to the compute
    # dtype in-register (no extra HBM pass for the bf16 path).
    m = m_ref[...]
    x = x_ref[...].astype(m.dtype)
    o_ref[...] = jnp.dot(m, x, preferred_element_type=jnp.float32).astype(o_ref.dtype)


# ------------------------------ tiled wrapper ------------------------------ #
def householder_apply(M, X, *, out_dtype=None, target_tile_bytes=4 << 20,
                      force_row_tiled=False, max_tm=512):
    """out = M @ X  via Pallas.  M: (dim, dim) in the compute dtype, X: (dim, N)."""
    dim, N = X.shape
    assert M.shape == (dim, dim)
    out_dtype = out_dtype or X.dtype
    budget = _vmem_budget_bytes()

    m_bytes = _tile_bytes(dim, dim, M.dtype)
    x_col_bytes = _round_up(dim, _sublane(X.dtype)) * jnp.dtype(X.dtype).itemsize
    o_col_bytes = _round_up(dim, _sublane(out_dtype)) * jnp.dtype(out_dtype).itemsize

    # M's BlockSpec is double-buffered by default (constant index map prevents
    # re-DMA, but budget for two copies to stay honest).
    resident_ok = (2 * m_bytes) <= budget // 2

    if resident_ok and not force_row_tiled:
        # ---- resident-M path: grid over column tiles only -------------------
        avail = max(0, budget - 2 * m_bytes - (2 << 20))
        bn_vmem = max(_LANE, (avail // max(1, 2 * (x_col_bytes + o_col_bytes)))
                      // _LANE * _LANE)
        bn_tgt = max(_LANE, _round_up(max(1, target_tile_bytes // max(1, x_col_bytes)),
                                      _LANE))
        bn = min(bn_tgt, bn_vmem)
        if N <= _LANE or bn >= N:
            bn = N  # single full-width block (block == array dim is always legal)
        grid = (pl.cdiv(N, bn),)
        in_specs = [
            pl.BlockSpec((dim, dim), lambda j: (0, 0)),   # M, VMEM-resident
            pl.BlockSpec((dim, bn), lambda j: (0, j)),    # streamed X column tile
        ]
        out_specs = pl.BlockSpec((dim, bn), lambda j: (0, j))
        semantics = ("parallel",)
        need = (2 * m_bytes
                + 2 * (_tile_bytes(dim, bn, X.dtype) + _tile_bytes(dim, bn, out_dtype)))
    else:
        # ---- row-tiled path: M streamed in (tm, dim) row blocks; the X column
        #      tile is constant across the inner row axis.  Full-K dot per tile.
        if N <= _LANE:
            bn = N
        else:
            bn_budget = max(_LANE, ((budget // 3) // max(1, 2 * x_col_bytes))
                            // _LANE * _LANE)
            bn_tgt = max(_LANE, (target_tile_bytes // max(1, x_col_bytes))
                         // _LANE * _LANE)
            bn = min(bn_tgt, bn_budget)
            if bn >= N:
                bn = N
        # TODO(synk): add a K-tiled accumulator path for dim so large that even a
        # (dim, 128) X tile exceeds VMEM.
        x_tile = 2 * _tile_bytes(dim, bn, X.dtype)
        avail = max(0, budget - x_tile - (2 << 20))
        per_row = 2 * (_round_up(dim, _LANE) * jnp.dtype(M.dtype).itemsize
                       + _round_up(bn, _LANE) * jnp.dtype(out_dtype).itemsize)
        tm = max(8, min(max_tm, (avail // max(1, per_row)) // 8 * 8))
        if tm >= dim:
            tm = dim
        grid = (pl.cdiv(N, bn), pl.cdiv(dim, tm))  # columns outer, rows inner
        in_specs = [
            pl.BlockSpec((tm, dim), lambda j, i: (i, 0)),   # streamed M row block
            pl.BlockSpec((dim, bn), lambda j, i: (0, j)),   # X tile, constant over rows
        ]
        out_specs = pl.BlockSpec((tm, bn), lambda j, i: (i, j))
        semantics = ("parallel", "parallel")
        need = (2 * _tile_bytes(tm, dim, M.dtype)
                + 2 * _tile_bytes(dim, bn, X.dtype)
                + 2 * _tile_bytes(tm, bn, out_dtype))

    vmem_limit = int(min(max(need + (2 << 20), 16 << 20), _vmem_cap_bytes()))

    return pl.pallas_call(
        _hh_matmul_kernel,
        out_shape=jax.ShapeDtypeStruct((dim, N), out_dtype),
        grid=grid,
        in_specs=in_specs,
        out_specs=out_specs,
        compiler_params=pltpu.CompilerParams(
            dimension_semantics=semantics,
            vmem_limit_bytes=vmem_limit,
        ),
    )(M, X)


@functools.partial(jax.jit, static_argnames=("use_bf16", "target_tile_bytes",
                                              "force_row_tiled", "max_tm"))
def householder_forward(weights, X, *, use_bf16=False, target_tile_bytes=4 << 20,
                        force_row_tiled=False, max_tm=512):
    """Pallas implementation of HouseHolder.forward.  X: (dim, N).

    Note: if weights are static across many calls, precompute M = build_M(...)
    once and call householder_apply(M, X, ...) directly.
    With use_bf16=True the MXU runs bf16 x bf16 -> f32 (expect ~1e-2 level error).
    """
    compute_dtype = jnp.bfloat16 if use_bf16 else X.dtype
    M = build_M(weights, compute_dtype)
    return householder_apply(M, X, out_dtype=X.dtype,
                             target_tile_bytes=target_tile_bytes,
                             force_row_tiled=force_row_tiled, max_tm=max_tm)


# --------------------------- pure-JAX reference ---------------------------- #
def householder_ref(weights: jnp.ndarray, X: jnp.ndarray):
    """Unfused reference matching the PyTorch module expression exactly."""
    dim = X.shape[0]
    pad = _next_pow2(dim) - dim
    W, Y = build_WY(weights)
    Xp = jnp.pad(X, ((0, pad), (0, 0)))
    return X + (W.T @ (Y @ Xp))[:dim]


if __name__ == "__main__":
    # dim=24 -> p_dim=32, pad=8 (exercises the identity-padded WY build).
    # N=300 is NOT a multiple of 128: ragged edge is handled by the Pallas edge
    # block instead of host-side pad/slice.
    dim, N = 24, 300
    key = jax.random.PRNGKey(0)
    kw, kx = jax.random.split(key)
    weights = jax.random.normal(kw, (dim, dim), dtype=jnp.float32)  # nn.Parameter(torch.eye(dim)) shape
    X = jax.random.normal(kx, (dim, N), dtype=jnp.float32)

    ref = householder_ref(weights, X)

    # 1) resident-M path, single full-width column block.
    out = jax.block_until_ready(householder_forward(weights, X))
    assert out.shape == (dim, N)
    assert jnp.allclose(out, ref, atol=1e-4, rtol=1e-4), "resident path mismatch"

    # 2) resident-M path, multi-step grid with a ragged edge block.
    out_tiled = jax.block_until_ready(
        householder_forward(weights, X, target_tile_bytes=_LANE * dim * 4))
    assert jnp.allclose(out_tiled, ref, atol=1e-4, rtol=1e-4), "tiled path mismatch"

    # 3) row-tiled-M path (the large-dim configuration, forced at a small shape).
    out_rows = jax.block_until_ready(
        householder_forward(weights, X, force_row_tiled=True, max_tm=8))
    assert jnp.allclose(out_rows, ref, atol=1e-4, rtol=1e-4), "row-tiled path mismatch"

    # 4) bf16 compute path (M in bf16, X cast in-kernel, f32 accumulation).
    out_bf16 = jax.block_until_ready(householder_forward(weights, X, use_bf16=True))
    assert jnp.allclose(out_bf16, ref, atol=2.5e-1, rtol=5e-2), "bf16 path mismatch"

    print("KERNEL_OK")
</pallas_src>

<mosaic_0001>
module attributes {stable_mosaic.version = 11 : i64} {
  func.func @_hh_matmul_kernel(%arg0: i32, %arg1: memref<24x24xf32, #tpu.memory_space<vmem>>, %arg2: memref<24x300xf32, #tpu.memory_space<vmem>>, %arg3: memref<24x300xf32, #tpu.memory_space<vmem>>) attributes {dimension_semantics = [#tpu.dimension_semantics<parallel>], iteration_bounds = array<i64: 1>, scalar_prefetch = 0 : i64, scratch_operands = 0 : i64, tpu.core_type = #tpu.core_type<tc>, window_params = [{pipeline_mode = #tpu.pipeline_mode<synchronous>, transform_indices = @transform_0, window_bounds = array<i64: 24, 24>}, {transform_indices = @transform_1, window_bounds = array<i64: 24, 300>}, {transform_indices = @transform_2, window_bounds = array<i64: 24, 300>}]} {
    %c0 = arith.constant 0 : index
    %c0_0 = arith.constant 0 : index
    %0 = vector.load %arg1[%c0, %c0_0] : memref<24x24xf32, #tpu.memory_space<vmem>>, vector<24x24xf32>
    %c0_1 = arith.constant 0 : index
    %c0_2 = arith.constant 0 : index
    %1 = vector.load %arg2[%c0_1, %c0_2] : memref<24x300xf32, #tpu.memory_space<vmem>>, vector<24x300xf32>
    %cst = arith.constant dense<0.000000e+00> : vector<24x300xf32>
    %2 = tpu.matmul %0, %1, %cst {dimension_numbers = #tpu.dot_dimension_numbers<[1], [0], [0], [1], [0, 0, 1, 1], [], []>} : vector<24x24xf32>, vector<24x300xf32>, vector<24x300xf32> -> vector<24x300xf32>
    %c0_3 = arith.constant 0 : index
    %c0_4 = arith.constant 0 : index
    %3 = vector.load %arg3[%c0_3, %c0_4] : memref<24x300xf32, #tpu.memory_space<vmem>>, vector<24x300xf32>
    tpu.vector_store %arg3[%c0_3, %c0_4], %2 {strides = array<i32>} : memref<24x300xf32, #tpu.memory_space<vmem>>, vector<24x300xf32>,
    return
  }
  func.func @transform_0(%arg0: i32) -> (i32, i32) {
    %c0_i32 = arith.constant 0 : i32
    %c0_i32_0 = arith.constant 0 : i32
    %c0_i32_1 = arith.constant 0 : i32
    return %c0_i32, %c0_i32_0 : i32, i32
  }
  func.func @transform_1(%arg0: i32) -> (i32, i32) {
    %c0_i32 = arith.constant 0 : i32
    %c0_i32_0 = arith.constant 0 : i32
    return %c0_i32, %arg0 : i32, i32
  }
  func.func @transform_2(%arg0: i32) -> (i32, i32) {
    %c0_i32 = arith.constant 0 : i32
    %c0_i32_0 = arith.constant 0 : i32
    return %c0_i32, %arg0 : i32, i32
  }
}

</mosaic_0001>

<llo_original>
// kernel: householder_forward.1
$region0: #{householder_forward.1}
  #allocation0 [shape = 'u32[]', space=smem, size = 0x4, offset = 0x4, fixed_abs, tag = 'smem constant byte address 0x4 - core index']
  #allocation1 [shape = 'u32[144,128]{1,0:T(1,128)}', space=vmem, size = 0x12000, scoped, tag = 'internal scratch']
  %s0 = inlined_call_operand.vmem [shape: f32[24,24], index: 0, kind: input, shape index: {}]
  %s1 = inlined_call_operand.vmem [shape: f32[24,300], index: 1, kind: input, shape index: {}]
  %s2 = inlined_call_operand.hbm [shape: f32[24,300], index: 2, kind: output, shape index: {}]
  %s3 = sld [smem:[#allocation0]]
  $region18: #{householder_forward.1} parent=0
    _
  %s5 = ssub.s32 1, %s3
  %s6 = scalar_select 0, %s5, %s3
  $region1: #{householder_forward.1} parent=0
    #allocation2 [shape = 'u8[36864]{0}', space=vmem, size = 0x9000, scoped, tag = 'output window, operand 0, single buffered']
    #allocation3 [shape = 's32[1]{0}', space=sflag, size = 0x4, scoped, tag = 'scoped memory for householder_forward.1']
    %7 = vsyncpa [#allocation3], 0
    // Predicated region
    $region2: #{householder_forward.1} parent=1 // pred_check
      _
    $region3: #{householder_forward.1} parent=1 // pred_check_branch
      %9 = sbr.rel (0) target = $region5
    $region4: #{householder_forward.1} parent=1 // pred_region
      _
    $region5: #{householder_forward.1} parent=1 // pred_fallthru
      _
    // Predicated region
    $region6: #{householder_forward.1} parent=1 // pred_check
      _
    $region7: #{householder_forward.1} parent=1 // pred_check_branch
      %11 = sbr.rel (0) target = $region9
    $region8: #{householder_forward.1} parent=1 // pred_region
      _
    $region9: #{householder_forward.1} parent=1 // pred_fallthru
      _
    %v12 = vld [vmem:[%s0] sm:$0xff]
    %v13 = vld [vmem:[%s0 + $0x8] sm:$0xff]
    %v14 = vld [vmem:[%s0 + $0x10] sm:$0xff]
    %v15 = vld [vmem:[%s1] sm:$0xff]
    %v16 = vld [vmem:[%s1 + $0x8] sm:$0xff]
    %v17 = vld [vmem:[%s1 + $0x10] sm:$0xff]
    %v18 = vld [vmem:[%s1 + $0x18] sm:$0xff]
    %v19 = vld [vmem:[%s1 + $0x20] sm:$0xff]
    %v20 = vld [vmem:[%s1 + $0x28] sm:$0xff]
    %v21 = vld [vmem:[%s1 + $0x30] sm:$0xff]
    %v22 = vld [vmem:[%s1 + $0x38] sm:$0xff]
    %v23 = vld [vmem:[%s1 + $0x40] sm:$0xff]
    %vm24 = vcmask 195584
    %v26 = vsel %vm24, %v12, 0
    %v29 = vsel %vm24, %v13, 0
    %v32 = vsel %vm24, %v14, 0
    %34 = vmatprep.subr.mxu0 %v16
    %35 = vmatpush1.msra.mxu0 %v15
    %36 = vmatprep.subr.mxu0 %v19
    %37 = vmatpush1.msra.mxu0 %v18
    %38 = vmatprep.subr.mxu0 %v22
    %39 = vmatpush1.msra.mxu0 %v21
    %40 = vmatprep.subr.mxu0 0.0
    %41 = vmatpush1.msra.mxu0 0.0
    %42 = vmatprep.subr.mxu0 0.0
    %43 = vmatpush1.msra.mxu0 0.0
    %44 = vmatprep.subr.mxu0 0.0
    %45 = vmatpush1.msra.mxu0 0.0
    %46 = vmatprep.subr.mxu0 0.0
    %47 = vmatpush1.msra.mxu0 0.0
    %48 = vmatprep.subr.mxu0 0.0
    %49 = vmatpush1.msra.mxu0 0.0
    %50 = vmatprep.subr.mxu0 0.0
    %51 = vmatpush1.msra.mxu0 0.0
    %52 = vmatprep.subr.mxu0 0.0
    %53 = vmatpush1.msra.mxu0 0.0
    %54 = vmatprep.subr.mxu0 0.0
    %55 = vmatpush1.msra.mxu0 0.0
    %56 = vmatprep.subr.mxu0 0.0
    %57 = vmatpush1.msra.mxu0 0.0
    %58 = vmatprep.subr.mxu0 0.0
    %59 = vmatpush1.msra.mxu0 0.0
    %60 = vmatprep.subr.mxu0 0.0
    %61 = vmatpush1.msra.mxu0 0.0
    %62 = vmatprep.subr.mxu0 0.0
    %63 = vmatpush1.msra.mxu0 0.0
    %64 = vmatprep.subr.mxu0 0.0
    %65 = vmatpush1.msra.mxu0 0.0
    %66 = vmatprep.subr.mxu0 0.0
    %67 = vmatpush1.msra.mxu0 0.0
    %68 = vmatprep.subr.mxu0 0.0
    %69 = vmatpush1.msra.mxu0 0.0
    %70 = vmatprep.subr.mxu0 0.0
    %71 = vmatpush1.msra.mxu0 0.0
    %72 = vmatprep.subr.mxu0 0.0
    %73 = vmatpush1.msra.mxu0 0.0
    %74 = vmatprep.subr.mxu0 0.0
    %75 = vmatpush1.msra.mxu0 0.0
    %76 = vmatprep.subr.mxu0 0.0
    %77 = vmatpush1.msra.mxu0 0.0
    %78 = vmatprep.subr.mxu0 0.0
    %79 = vmatpush1.msra.mxu0 0.0
    %80 = vmatprep.subr.mxu0 0.0
    %81 = vmatpush1.msra.mxu0 0.0
    %82 = vmatprep.subr.mxu0 0.0
    %83 = vmatpush1.msra.mxu0 0.0
    %84 = vmatprep.subr.mxu0 0.0
    %85 = vmatpush1.msra.mxu0 0.0
    %86 = vmatprep.subr.mxu0 0.0
    %87 = vmatpush1.msra.mxu0 0.0
    %88 = vmatprep.subr.mxu0 0.0
    %89 = vmatpush1.msra.mxu0 0.0
    %90 = vmatprep.subr.mxu0 0.0
    %91 = vmatpush1.msra.mxu0 0.0
    %92 = vmatprep.subr.mxu0 0.0
    %93 = vmatpush1.msra.mxu0 0.0
    %94 = vmatprep.subr.mxu0 0.0
    %95 = vmatpush1.msra.mxu0 0.0
    %96 = vmatprep.subr.mxu0 0.0
    %97 = vmatpush1.msra.mxu0 0.0
    %98 = vmatprep.mubr.f32.mxu0 0.0
    %99 = vmatmul.mubr.f32.gmra.mrb[0].mxu0 %v26
    %v100 = vpop.f32.mrb[0].mxu0
    %v101 = vadd.f32 0.0, %v100
    %v102 = vpop.f32.mrb[0].mxu0
    %v103 = vadd.f32 0.0, %v102
    %104 = vmatprep.mubr.f32.mxu0 0.0
    %105 = vmatmul.mubr.f32.gmra.mrb[0].mxu0 %v29
    %v106 = vpop.f32.mrb[0].mxu0
    %v107 = vadd.f32 0.0, %v106
    %v108 = vpop.f32.mrb[0].mxu0
    %v109 = vadd.f32 0.0, %v108
    %110 = vmatprep.mubr.f32.mxu0 0.0
    %111 = vmatmul.mubr.f32.gmra.mrb[0].mxu0 %v32
    %v112 = vpop.f32.mrb[0].mxu0
    %v113 = vadd.f32 0.0, %v112
    %v114 = vpop.f32.mrb[0].mxu0
    %v115 = vadd.f32 0.0, %v114
    %116 = vdwg.mxu0
    %117 = vmatprep.subr.mxu0 0.0
    %118 = vmatpush1.msra.mxu0 %v17
    %119 = vmatprep.subr.mxu0 0.0
    %120 = vmatpush1.msra.mxu0 %v20
    %121 = vmatprep.subr.mxu0 0.0
    %122 = vmatpush1.msra.mxu0 %v23
    %123 = vmatprep.subr.mxu0 0.0
    %124 = vmatpush1.msra.mxu0 0.0
    %125 = vmatprep.subr.mxu0 0.0
    %126 = vmatpush1.msra.mxu0 0.0
    %127 = vmatprep.subr.mxu0 0.0
    %128 = vmatpush1.msra.mxu0 0.0
    %129 = vmatprep.subr.mxu0 0.0
    %130 = vmatpush1.msra.mxu0 0.0
    %131 = vmatprep.subr.mxu0 0.0
    %132 = vmatpush1.msra.mxu0 0.0
    %133 = vmatprep.subr.mxu0 0.0
    %134 = vmatpush1.msra.mxu0 0.0
    %135 = vmatprep.subr.mxu0 0.0
    %136 = vmatpush1.msra.mxu0 0.0
    %137 = vmatprep.subr.mxu0 0.0
    %138 = vmatpush1.msra.mxu0 0.0
    %139 = vmatprep.subr.mxu0 0.0
    %140 = vmatpush1.msra.mxu0 0.0
    %141 = vmatprep.subr.mxu0 0.0
    %142 = vmatpush1.msra.mxu0 0.0
    %143 = vmatprep.subr.mxu0 0.0
    %144 = vmatpush1.msra.mxu0 0.0
    %145 = vmatprep.subr.mxu0 0.0
    %146 = vmatpush1.msra.mxu0 0.0
    %147 = vmatprep.subr.mxu0 0.0
    %148 = vmatpush1.msra.mxu0 0.0
    %149 = vmatprep.subr.mxu0 0.0
    %150 = vmatpush1.msra.mxu0 0.0
    %151 = vmatprep.subr.mxu0 0.0
    %152 = vmatpush1.msra.mxu0 0.0
    %153 = vmatprep.subr.mxu0 0.0
    %154 = vmatpush1.msra.mxu0 0.0
    %155 = vmatprep.subr.mxu0 0.0
    %156 = vmatpush1.msra.mxu0 0.0
    %157 = vmatprep.subr.mxu0 0.0
    %158 = vmatpush1.msra.mxu0 0.0
    %159 = vmatprep.subr.mxu0 0.0
    %160 = vmatpush1.msra.mxu0 0.0
    %161 = vmatprep.subr.mxu0 0.0
    %162 = vmatpush1.msra.mxu0 0.0
    %163 = vmatprep.subr.mxu0 0.0
    %164 = vmatpush1.msra.mxu0 0.0
    %165 = vmatprep.subr.mxu0 0.0
    %166 = vmatpush1.msra.mxu0 0.0
    %167 = vmatprep.subr.mxu0 0.0
    %168 = vmatpush1.msra.mxu0 0.0
    %169 = vmatprep.subr.mxu0 0.0
    %170 = vmatpush1.msra.mxu0 0.0
    %171 = vmatprep.subr.mxu0 0.0
    %172 = vmatpush1.msra.mxu0 0.0
    %173 = vmatprep.subr.mxu0 0.0
    %174 = vmatpush1.msra.mxu0 0.0
    %175 = vmatprep.subr.mxu0 0.0
    %176 = vmatpush1.msra.mxu0 0.0
    %177 = vmatprep.subr.mxu0 0.0
    %178 = vmatpush1.msra.mxu0 0.0
    %179 = vmatprep.subr.mxu0 0.0
    %180 = vmatpush1.msra.mxu0 0.0
    %181 = vmatprep.mubr.f32.mxu0 0.0
    %182 = vmatmul.mubr.f32.gmra.mrb[0].mxu0 %v26
    %v183 = vpop.f32.mrb[0].mxu0
    %v184 = vadd.f32 0.0, %v183
    %v185 = vpop.f32.mrb[0].mxu0
    %186 = vmatprep.mubr.f32.mxu0 0.0
    %187 = vmatmul.mubr.f32.gmra.mrb[0].mxu0 %v29
    %v188 = vpop.f32.mrb[0].mxu0
    %v189 = vadd.f32 0.0, %v188
    %v190 = vpop.f32.mrb[0].mxu0
    %191 = vmatprep.mubr.f32.mxu0 0.0
    %192 = vmatmul.mubr.f32.gmra.mrb[0].mxu0 %v32
    %v193 = vpop.f32.mrb[0].mxu0
    %v194 = vadd.f32 0.0, %v193
    %v195 = vpop.f32.mrb[0].mxu0
    %196 = vdwg.mxu0
    %197 = vst [vmem:[#allocation2] sm:$0xff] %v101
    %198 = vst [vmem:[#allocation2 + $0x8] sm:$0xff] %v103
    %vm199 = vcmask 359424
    %200 = vst.msk [vmem:[#allocation2 + $0x10] sm:$0xff] %vm199, %v184
    %201 = vst [vmem:[#allocation2 + $0x18] sm:$0xff] %v107
    %202 = vst [vmem:[#allocation2 + $0x20] sm:$0xff] %v109
    %203 = vst.msk [vmem:[#allocation2 + $0x28] sm:$0xff] %vm199, %v189
    %204 = vst [vmem:[#allocation2 + $0x30] sm:$0xff] %v113
    %205 = vst [vmem:[#allocation2 + $0x38] sm:$0xff] %v115
    %206 = vst.msk [vmem:[#allocation2 + $0x40] sm:$0xff] %vm199, %v194
    // Predicated region
    $region10: #{householder_forward.1} parent=1 // pred_check
      _
    $region11: #{householder_forward.1} parent=1 // pred_check_branch
      %208 = sbr.rel (0) target = $region13
    $region12: #{householder_forward.1} parent=1 // pred_region
      %s210 = ssub.s32 1152, 1152
      %211 = vsyncadd [#allocation3], %s210
      %s212 = sshll.u32 [#allocation2], 4
      %s213 = int_to_ptr.vmem [resolvable:$true] %s212
      %218 = dma.vmem_to_hbm [thread:$0]  %s213, 1152, %s2, [#allocation3], 384, 384, 24
    $region13: #{householder_forward.1} parent=1 // pred_fallthru
      _
    // Predicated region
    $region14: #{householder_forward.1} parent=1 // pred_check
      _
    $region15: #{householder_forward.1} parent=1 // pred_check_branch
      %220 = sbr.rel (0) target = $region17
    $region16: #{householder_forward.1} parent=1 // pred_region
      %221 = dma.done [#allocation3], 1152
    $region17: #{householder_forward.1} parent=1 // pred_fallthru
      _
    %222 = vsyncpa [#allocation3], 1

</llo_original>
